<compile_context>
chip_gen: v7x
topology: tpu7x:2x2x1
jax: 0.10.0
libtpu: 0.0.40
codegen_flags: <defaults>
</compile_context>

<pallas_src>
import functools

import jax
import jax.numpy as jnp
import numpy as np
from jax import lax
from jax.experimental import pallas as pl
from jax.experimental.pallas import tpu as pltpu


# -----------------------------------------------------------------------------
# Dropout mask: deterministic counter-based hash of the global element index.
# TODO(synk): distributionally equivalent to torch.nn.Dropout but not bitwise
# identical to torch's RNG stream (no way to reproduce torch's generator).
# -----------------------------------------------------------------------------
def _uniform24(idx_i32, seed_i32):
    """lowbias32 hash -> integer-valued f32 uniform in [0, 2**24)."""
    x = (idx_i32.astype(jnp.uint32)
         + seed_i32.astype(jnp.uint32) * jnp.uint32(2654435761))
    x = x ^ (x >> 16)
    x = x * jnp.uint32(0x7FEB352D)
    x = x ^ (x >> 15)
    x = x * jnp.uint32(0x846CA68B)
    x = x ^ (x >> 16)
    # top 24 bits -> int32 (exact) -> f32; avoids unsigned compares / uitofp.
    return (x >> 8).astype(jnp.int32).astype(jnp.float32)


def _apply_dropout(acc_f32, row0, col0, seed, *, dout_total, dropout_rate,
                   inv_keep):
    rows = row0 + lax.broadcasted_iota(jnp.int32, acc_f32.shape, 0)
    cols = col0 + lax.broadcasted_iota(jnp.int32, acc_f32.shape, 1)
    u = _uniform24(rows * jnp.int32(dout_total) + cols, seed)
    keep = u >= jnp.float32(dropout_rate * float(1 << 24))
    return jnp.where(keep, acc_f32 * jnp.float32(inv_keep), jnp.float32(0.0))


# -----------------------------------------------------------------------------
# Path A kernel: weight resident in VMEM, 1-D grid over M.  No pl.when at all.
# -----------------------------------------------------------------------------
def _mp_resident_kernel(seed_ref, x_ref, w_ref, b_ref, o_ref, *,
                        dropout_rate, training, inv_keep, dout_total):
    i = pl.program_id(0)          # program_id only at kernel top level
    acc = jnp.dot(x_ref[...], w_ref[...], preferred_element_type=jnp.float32)
    acc = acc + b_ref[...].astype(jnp.float32)
    if training and dropout_rate > 0.0:
        acc = _apply_dropout(acc, i * acc.shape[0], 0, seed_ref[0],
                             dout_total=dout_total, dropout_rate=dropout_rate,
                             inv_keep=inv_keep)
    o_ref[...] = acc.astype(o_ref.dtype)


# -----------------------------------------------------------------------------
# Path B kernel: 3-D tiled matmul with an f32 VMEM accumulator (big weights).
# program_id / num_programs / scalar reads hoisted OUT of the pl.when bodies.
# -----------------------------------------------------------------------------
def _mp_tiled_kernel(seed_ref, x_ref, w_ref, b_ref, o_ref, acc_ref, *,
                     dropout_rate, training, inv_keep, dout_total):
    i = pl.program_id(0)
    j = pl.program_id(1)
    k = pl.program_id(2)
    nk = pl.num_programs(2)
    tm, tn = acc_ref.shape
    use_dropout = training and dropout_rate > 0.0
    if use_dropout:
        seed = seed_ref[0]
        row0 = i * tm
        col0 = j * tn

    @pl.when(k == 0)
    def _init():
        acc_ref[...] = jnp.zeros_like(acc_ref)

    acc_ref[...] += jnp.dot(x_ref[...], w_ref[...],
                            preferred_element_type=jnp.float32)

    @pl.when(k == nk - 1)
    def _finalize():
        acc = acc_ref[...] + b_ref[...].astype(jnp.float32)
        if use_dropout:
            acc = _apply_dropout(acc, row0, col0, seed, dout_total=dout_total,
                                 dropout_rate=dropout_rate, inv_keep=inv_keep)
        o_ref[...] = acc.astype(o_ref.dtype)


# -----------------------------------------------------------------------------
# Wrapper
# -----------------------------------------------------------------------------
def _round_up(x, m):
    return ((x + m - 1) // m) * m


def _largest_tile_divisor(n, target, quantum):
    """Largest t <= target with t % quantum == 0 and n % t == 0, else None."""
    if n % quantum != 0:
        return None
    t = min(target, n)
    t = (t // quantum) * quantum
    while t >= quantum and n % t != 0:
        t -= quantum
    return t if t >= quantum else None


def mp_encoder_forward(x, weight, bias, *, dropout_rate=0.0, training=False,
                       seed=0, compute_dtype=jnp.bfloat16,
                       tm=None, tn=512, tk=512,
                       force_tiled=False, vmem_budget_bytes=40 * (1 << 20)):
    """dropout(x @ weight + bias) with a Pallas TPU kernel.

    x:      (..., din)
    weight: (din, dout)  -- transpose of torch nn.Linear.weight
    bias:   (dout,)
    compute_dtype: dtype fed to the MXU (default bf16; accumulation, bias add
      and dropout always run in f32).  Pass jnp.float32 for exact f32 matmul.
    """
    orig_shape = x.shape
    out_dtype = x.dtype
    din = orig_shape[-1]
    dout = weight.shape[1]

    x2 = x.reshape(-1, din)
    M = x2.shape[0]

    if compute_dtype is not None:
        x2 = x2.astype(compute_dtype)
        weight = weight.astype(compute_dtype)
    ic = jnp.dtype(x2.dtype).itemsize
    oc = jnp.dtype(out_dtype).itemsize

    b2 = bias.reshape(1, dout)
    seed_arr = jnp.array([seed], dtype=jnp.int32)
    inv_keep = 1.0 / (1.0 - dropout_rate) if dropout_rate < 1.0 else 0.0
    common = dict(dropout_rate=float(dropout_rate), training=bool(training),
                  inv_keep=float(inv_keep), dout_total=int(dout))

    w_bytes = din * dout * ic
    weight_resident = (not force_tiled) and (2 * w_bytes <= vmem_budget_bytes // 3)

    if weight_resident:
        # ---- Path A: weight resident in VMEM; 1-D parallel grid over M. -----
        # x/out tiles double-buffered; the dot's f32 intermediate is tm*dout*4.
        per_row = 2 * din * ic + 2 * dout * oc + 4 * dout
        tm_cap = max(8, (vmem_budget_bytes - 2 * w_bytes - (1 << 20)) // per_row)
        tm_eff = int(min(tm if tm is not None else 1024, tm_cap))
        if M <= tm_eff:
            tm_eff = M
            if M >= 64:                 # >=2 "parallel" blocks for dual-TC chips
                tm_eff = _round_up(pl.cdiv(M, 2), 8)
        else:
            tm_eff = max(8, (tm_eff // 8) * 8)
        m_grid = pl.cdiv(M, tm_eff)

        footprint = (2 * tm_eff * din * ic + 2 * w_bytes
                     + 2 * tm_eff * dout * oc + tm_eff * dout * 4
                     + 2 * dout * 4)
        grid = (m_grid,)
        in_specs = [
            pl.BlockSpec((tm_eff, din), lambda i, s: (i, 0)),   # x tile
            pl.BlockSpec((din, dout), lambda i, s: (0, 0)),     # full weight
            pl.BlockSpec((1, dout), lambda i, s: (0, 0)),       # bias
        ]
        out_specs = pl.BlockSpec((tm_eff, dout), lambda i, s: (i, 0))
        scratch_shapes = []
        kernel = functools.partial(_mp_resident_kernel, **common)
        dim_sem = ("parallel",)
        bytes_accessed = M * din * ic + w_bytes + dout * 4 + M * dout * oc
    else:
        # ---- Path B: 3-D tiled matmul with an f32 VMEM accumulator. ---------
        tm_b = int(tm) if tm is not None else 512
        tm_eff = M if M <= tm_b else max(8, (tm_b // 8) * 8)
        m_grid = pl.cdiv(M, tm_eff)

        if dout <= tn:
            tn_eff = dout                       # full extent (lane-legal)
        elif tn >= 256:
            tn_eff = (tn // 256) * 256          # v6e/v7x MXU-friendly width
        else:
            tn_eff = max(128, (tn // 128) * 128)
        n_grid = pl.cdiv(dout, tn_eff)          # ragged last N block is clipped

        tk_eff = (_largest_tile_divisor(din, tk, 256)
                  or _largest_tile_divisor(din, tk, 128) or din)
        # TODO(synk): for very large din with din % 128 != 0, zero-pad K
        # (numerically exact) instead of this single full-K block fallback.
        k_grid = din // tk_eff

        footprint = (2 * tm_eff * tk_eff * ic + 2 * tk_eff * tn_eff * ic
                     + 2 * tm_eff * tn_eff * oc + 2 * tm_eff * tn_eff * 4
                     + 2 * tn_eff * 4)
        grid = (m_grid, n_grid, k_grid)
        in_specs = [
            pl.BlockSpec((tm_eff, tk_eff), lambda i, j, k, s: (i, k)),   # x
            pl.BlockSpec((tk_eff, tn_eff), lambda i, j, k, s: (k, j)),   # W
            pl.BlockSpec((1, tn_eff), lambda i, j, k, s: (0, j)),        # bias
        ]
        out_specs = pl.BlockSpec((tm_eff, tn_eff), lambda i, j, k, s: (i, j))
        scratch_shapes = [pltpu.VMEM((tm_eff, tn_eff), jnp.float32)]
        kernel = functools.partial(_mp_tiled_kernel, **common)
        dim_sem = ("parallel", "parallel", "arbitrary")
        bytes_accessed = (n_grid * M * din * ic + m_grid * w_bytes
                          + dout * 4 + M * dout * oc)

    # Footprint already includes double buffers; clamp under v7x's 64 MiB VMEM.
    vmem_limit = int(min(max(footprint + (2 << 20), 16 << 20), 48 << 20))
    cost = pl.CostEstimate(flops=2 * M * din * dout, transcendentals=0,
                           bytes_accessed=int(bytes_accessed))

    out = pl.pallas_call(
        kernel,
        out_shape=jax.ShapeDtypeStruct((M, dout), out_dtype),
        grid_spec=pltpu.PrefetchScalarGridSpec(
            num_scalar_prefetch=1,
            grid=grid,
            in_specs=in_specs,
            out_specs=out_specs,
            scratch_shapes=scratch_shapes,
        ),
        compiler_params=pltpu.CompilerParams(
            dimension_semantics=dim_sem,
            vmem_limit_bytes=vmem_limit),
        cost_estimate=cost,
    )(seed_arr, x2, weight, b2)

    return out.reshape(*orig_shape[:-1], dout)


# -----------------------------------------------------------------------------
# Self-test
# -----------------------------------------------------------------------------
def _np_ref(x, w, b):
    return (np.asarray(x, np.float64) @ np.asarray(w, np.float64)
            + np.asarray(b, np.float64)).astype(np.float32)


if __name__ == "__main__":
    # MPEncoder config: dim_fts = [20, 12] -> input_size = 32, dim_embed = 32.
    dim_fts = (20, 12)
    input_size = sum(dim_fts)
    dim_embed = 32
    dropout_rate = 0.1
    batch, max_seq_len = 2, 8

    key = jax.random.PRNGKey(0)
    kx, kw, kb, kxr = jax.random.split(key, 4)

    bound = 1.0 / np.sqrt(input_size)      # torch nn.Linear default init range
    weight = jax.random.uniform(kw, (input_size, dim_embed), dtype=jnp.float32,
                                minval=-bound, maxval=bound)
    bias = jax.random.uniform(kb, (dim_embed,), dtype=jnp.float32,
                              minval=-bound, maxval=bound)
    x = jax.random.normal(kx, (batch, max_seq_len, input_size), dtype=jnp.float32)
    ref = _np_ref(x, weight, bias)

    # 1) eval mode, exact f32 compute (matches nn.Linear numerics).
    out = jax.block_until_ready(
        mp_encoder_forward(x, weight, bias, dropout_rate=dropout_rate,
                           training=False, compute_dtype=jnp.float32))
    assert out.shape == (batch, max_seq_len, dim_embed)
    np.testing.assert_allclose(np.asarray(out), ref, rtol=1e-5, atol=1e-5)

    # 2) eval mode, default bf16 MXU inputs (f32 accumulation) -> loose tol.
    out_bf = jax.block_until_ready(
        mp_encoder_forward(x, weight, bias, dropout_rate=dropout_rate,
                           training=False))
    np.testing.assert_allclose(np.asarray(out_bf), ref, rtol=3e-2, atol=3e-2)

    # 3) non-sequence (batch, dim_fts) input path.
    x2d = x[:, 0, :]
    out2d = jax.block_until_ready(
        mp_encoder_forward(x2d, weight, bias, training=False,
                           compute_dtype=jnp.float32))
    np.testing.assert_allclose(np.asarray(out2d), _np_ref(x2d, weight, bias),
                               rtol=1e-5, atol=1e-5)

    # 4) ragged M tail: both the forced tiled fallback (Path B) and the
    #    weight-resident path (Path A).
    xr = jax.random.normal(kxr, (3, 100, input_size), dtype=jnp.float32)
    refr = _np_ref(xr, weight, bias)
    outr = jax.block_until_ready(
        mp_encoder_forward(xr, weight, bias, training=False,
                           compute_dtype=jnp.float32, force_tiled=True, tm=128))
    np.testing.assert_allclose(np.asarray(outr), refr, rtol=1e-5, atol=1e-5)
    outr_a = jax.block_until_ready(
        mp_encoder_forward(xr, weight, bias, training=False,
                           compute_dtype=jnp.float32))
    np.testing.assert_allclose(np.asarray(outr_a), refr, rtol=1e-5, atol=1e-5)

    # 5) training mode: inverted dropout with a deterministic, tiling-invariant
    #    counter-based mask (M chosen so tiles divide evenly).
    xt = jax.random.normal(jax.random.PRNGKey(7), (3, 128, input_size),
                           dtype=jnp.float32)
    reft = _np_ref(xt, weight, bias)
    out_tr = jax.block_until_ready(
        mp_encoder_forward(xt, weight, bias, dropout_rate=dropout_rate,
                           training=True, seed=123, compute_dtype=jnp.float32))
    out_tr_np = np.asarray(out_tr)
    assert out_tr_np.shape == (3, 128, dim_embed)
    assert np.all(np.isfinite(out_tr_np))
    dropped = out_tr_np == 0.0
    zero_frac = float(dropped.mean())
    assert 0.05 <= zero_frac <= 0.15, f"unexpected dropout zero fraction {zero_frac}"
    kept = ~dropped
    np.testing.assert_allclose(out_tr_np[kept],
                               (reft / (1.0 - dropout_rate))[kept],
                               rtol=1e-5, atol=1e-5)

    # 6) dropout mask is identical between the resident and tiled paths.
    out_tr_tiled = jax.block_until_ready(
        mp_encoder_forward(xt, weight, bias, dropout_rate=dropout_rate,
                           training=True, seed=123, compute_dtype=jnp.float32,
                           force_tiled=True, tm=128))
    assert np.array_equal(np.asarray(out_tr_tiled) == 0.0, dropped)
    np.testing.assert_allclose(np.asarray(out_tr_tiled), out_tr_np,
                               rtol=1e-5, atol=1e-5)

    print("KERNEL_OK")
</pallas_src>

<mosaic_0001>
module attributes {stable_mosaic.version = 11 : i64} {
  func.func @_mp_resident_kernel(%arg0: i32, %arg1: memref<1xi32, #tpu.memory_space<smem>>, %arg2: memref<16x32xf32, #tpu.memory_space<vmem>>, %arg3: memref<32x32xf32, #tpu.memory_space<vmem>>, %arg4: memref<1x32xf32, #tpu.memory_space<vmem>>, %arg5: memref<16x32xf32, #tpu.memory_space<vmem>>) attributes {dimension_semantics = [#tpu.dimension_semantics<parallel>], iteration_bounds = array<i64: 1>, scalar_prefetch = 1 : i64, scratch_operands = 0 : i64, tpu.core_type = #tpu.core_type<tc>, window_params = [{transform_indices = @transform_0, window_bounds = array<i64: 16, 32>}, {pipeline_mode = #tpu.pipeline_mode<synchronous>, transform_indices = @transform_1, window_bounds = array<i64: 32, 32>}, {pipeline_mode = #tpu.pipeline_mode<synchronous>, transform_indices = @transform_2, window_bounds = array<i64: 1, 32>}, {transform_indices = @transform_3, window_bounds = array<i64: 16, 32>}]} {
    %c0 = arith.constant 0 : index
    %c0_0 = arith.constant 0 : index
    %0 = vector.load %arg2[%c0, %c0_0] : memref<16x32xf32, #tpu.memory_space<vmem>>, vector<16x32xf32>
    %c0_1 = arith.constant 0 : index
    %c0_2 = arith.constant 0 : index
    %1 = vector.load %arg3[%c0_1, %c0_2] : memref<32x32xf32, #tpu.memory_space<vmem>>, vector<32x32xf32>
    %cst = arith.constant dense<0.000000e+00> : vector<16x32xf32>
    %2 = tpu.matmul %0, %1, %cst {dimension_numbers = #tpu.dot_dimension_numbers<[1], [0], [0], [1], [0, 0, 1, 1], [], []>} : vector<16x32xf32>, vector<32x32xf32>, vector<16x32xf32> -> vector<16x32xf32>
    %c0_3 = arith.constant 0 : index
    %c0_4 = arith.constant 0 : index
    %3 = vector.load %arg4[%c0_3, %c0_4] : memref<1x32xf32, #tpu.memory_space<vmem>>, vector<1x32xf32>
    %4 = vector.broadcast %3 : vector<1x32xf32> to vector<16x32xf32>
    %5 = arith.addf %2, %4 : vector<16x32xf32>
    %c0_5 = arith.constant 0 : index
    %c0_6 = arith.constant 0 : index
    %6 = vector.load %arg5[%c0_5, %c0_6] : memref<16x32xf32, #tpu.memory_space<vmem>>, vector<16x32xf32>
    tpu.vector_store %arg5[%c0_5, %c0_6], %5 {strides = array<i32>} : memref<16x32xf32, #tpu.memory_space<vmem>>, vector<16x32xf32>,
    return
  }
  func.func @transform_0(%arg0: i32, %arg1: memref<1xi32, #tpu.memory_space<smem>>) -> (i32, i32) {
    %c0_i32 = arith.constant 0 : i32
    %c0_i32_0 = arith.constant 0 : i32
    return %arg0, %c0_i32 : i32, i32
  }
  func.func @transform_1(%arg0: i32, %arg1: memref<1xi32, #tpu.memory_space<smem>>) -> (i32, i32) {
    %c0_i32 = arith.constant 0 : i32
    %c0_i32_0 = arith.constant 0 : i32
    %c0_i32_1 = arith.constant 0 : i32
    return %c0_i32, %c0_i32_0 : i32, i32
  }
  func.func @transform_2(%arg0: i32, %arg1: memref<1xi32, #tpu.memory_space<smem>>) -> (i32, i32) {
    %c0_i32 = arith.constant 0 : i32
    %c0_i32_0 = arith.constant 0 : i32
    %c0_i32_1 = arith.constant 0 : i32
    return %c0_i32, %c0_i32_0 : i32, i32
  }
  func.func @transform_3(%arg0: i32, %arg1: memref<1xi32, #tpu.memory_space<smem>>) -> (i32, i32) {
    %c0_i32 = arith.constant 0 : i32
    %c0_i32_0 = arith.constant 0 : i32
    return %arg0, %c0_i32 : i32, i32
  }
}

</mosaic_0001>

<llo_original>
// kernel: tpu_custom_call.1
$region0: #{tpu_custom_call.1}
  #allocation0 [shape = 'u32[]', space=smem, size = 0x4, offset = 0x4, fixed_abs, tag = 'smem constant byte address 0x4 - core index']
  #allocation1 [shape = 'u32[144,128]{1,0:T(1,128)}', space=vmem, size = 0x12000, scoped, tag = 'internal scratch']
  #allocation2 [shape = 's32[1]{0}', space=sflag, size = 0x4, scoped, tag = 'scoped memory for tpu_custom_call.1']
  #allocation3 [shape = 's32[1]{0:T(128)S(6)}', space=smem, size = 0x200, scoped, tag = 'prefetched SMEM operand 0']
  %s0 = inlined_call_operand.<no memory space> [shape: s32[1], index: 0, kind: input, shape index: {}]
  %s1 = inlined_call_operand.hbm [shape: f32[16,32], index: 1, kind: input, shape index: {}]
  %s2 = inlined_call_operand.hbm [shape: f32[32,32], index: 2, kind: input, shape index: {}]
  %s3 = inlined_call_operand.vmem [shape: f32[1,32], index: 3, kind: input, shape index: {}]
  %s4 = inlined_call_operand.hbm [shape: f32[16,32], index: 4, kind: output, shape index: {}]
  %s5 = sld [smem:[#allocation0]]
  $region30: #{tpu_custom_call.1} parent=0
    _
  %s7 = ssub.s32 1, %s5
  %s8 = scalar_select 0, %s7, %s5
  %9 = sst [smem:[#allocation3]] %s0
  $region1: #{tpu_custom_call.1} parent=0
    #allocation4 [shape = 'u8[8192]{0}', space=vmem, size = 0x2000, scoped, tag = 'input window, operand 1, single buffered']
    #allocation5 [shape = 's32[1]{0}', space=sflag, size = 0x4, scoped, tag = 'scoped memory for tpu_custom_call.1']
    #allocation6 [shape = 's32[1]{0}', space=sflag, size = 0x4, scoped, tag = 'scoped memory for tpu_custom_call.1']
    #allocation7 [shape = 'u8[16384]{0}', space=vmem, size = 0x4000, scoped, tag = 'input window, operand 2, single buffered']
    #allocation8 [shape = 's32[1]{0}', space=sflag, size = 0x4, scoped, tag = 'scoped memory for tpu_custom_call.1']
    #allocation9 [shape = 'u8[8192]{0}', space=vmem, size = 0x2000, scoped, tag = 'output window, operand 0, single buffered']
    %10 = vsyncpa [#allocation5], 0
    %11 = vsyncpa [#allocation8], 0
    %12 = vsyncpa [#allocation6], 0
    // Predicated region
    $region2: #{tpu_custom_call.1} parent=1 // pred_check
      _
    $region3: #{tpu_custom_call.1} parent=1 // pred_check_branch
      %14 = sbr.rel (0) target = $region5
    $region4: #{tpu_custom_call.1} parent=1 // pred_region
      %s16 = ssub.s32 256, 256
      %17 = vsyncadd [#allocation5], %s16
      %s18 = sshll.u32 [#allocation4], 4
      %s19 = int_to_ptr.vmem [resolvable:$true] %s18
      %24 = dma.hbm_to_vmem [thread:$0]  %s1, 256, %s19, [#allocation5], 128, 128, 8
    $region5: #{tpu_custom_call.1} parent=1 // pred_fallthru
      _
    // Predicated region
    $region6: #{tpu_custom_call.1} parent=1 // pred_check
      _
    $region7: #{tpu_custom_call.1} parent=1 // pred_check_branch
      %26 = sbr.rel (0) target = $region9
    $region8: #{tpu_custom_call.1} parent=1 // pred_region
      %s28 = ssub.s32 512, 512
      %29 = vsyncadd [#allocation8], %s28
      %s30 = sshll.u32 [#allocation7], 4
      %s31 = int_to_ptr.vmem [resolvable:$true] %s30
      %36 = dma.hbm_to_vmem [thread:$0]  %s2, 512, %s31, [#allocation8], 128, 128, 8
    $region9: #{tpu_custom_call.1} parent=1 // pred_fallthru
      _
    // Predicated region
    $region10: #{tpu_custom_call.1} parent=1 // pred_check
      _
    $region11: #{tpu_custom_call.1} parent=1 // pred_check_branch
      %38 = sbr.rel (0) target = $region13
    $region12: #{tpu_custom_call.1} parent=1 // pred_region
      _
    $region13: #{tpu_custom_call.1} parent=1 // pred_fallthru
      _
    // Predicated region
    $region14: #{tpu_custom_call.1} parent=1 // pred_check
      _
    $region15: #{tpu_custom_call.1} parent=1 // pred_check_branch
      %40 = sbr.rel (0) target = $region17
    $region16: #{tpu_custom_call.1} parent=1 // pred_region
      %41 = dma.done [#allocation5], 256
    $region17: #{tpu_custom_call.1} parent=1 // pred_fallthru
      _
    // Predicated region
    $region18: #{tpu_custom_call.1} parent=1 // pred_check
      _
    $region19: #{tpu_custom_call.1} parent=1 // pred_check_branch
      %43 = sbr.rel (0) target = $region21
    $region20: #{tpu_custom_call.1} parent=1 // pred_region
      %44 = dma.done [#allocation8], 512
    $region21: #{tpu_custom_call.1} parent=1 // pred_fallthru
      _
    %v45 = vld [vmem:[#allocation4] sm:$0xff]
    %v46 = vld [vmem:[#allocation4 + $0x8] sm:$0xff]
    %v47 = vld [vmem:[#allocation7] sm:$0xff]
    %v48 = vld [vmem:[#allocation7 + $0x8] sm:$0xff]
    %v49 = vld [vmem:[#allocation7 + $0x10] sm:$0xff]
    %v50 = vld [vmem:[#allocation7 + $0x18] sm:$0xff]
    %v51 = vld [vmem:[%s3] sm:$0x1]
    %v53 = vlaneseq
    %v54 = vshrl.u32 %v53, 7
    %v55 = vsub.s32 0, %v54
    %v56 = vrot.slane %v51, %v55
    %vm58 = vcmask 261120
    %v60 = vsel %vm58, %v45, 0
    %v63 = vsel %vm58, %v46, 0
    %65 = vmatprep.subr.mxu0 0.0
    %66 = vmatpush1.msra.mxu0 %v47
    %67 = vmatprep.subr.mxu0 0.0
    %68 = vmatpush1.msra.mxu0 %v48
    %69 = vmatprep.subr.mxu0 0.0
    %70 = vmatpush1.msra.mxu0 %v49
    %71 = vmatprep.subr.mxu0 0.0
    %72 = vmatpush1.msra.mxu0 %v50
    %73 = vmatprep.subr.mxu0 0.0
    %74 = vmatpush1.msra.mxu0 0.0
    %75 = vmatprep.subr.mxu0 0.0
    %76 = vmatpush1.msra.mxu0 0.0
    %77 = vmatprep.subr.mxu0 0.0
    %78 = vmatpush1.msra.mxu0 0.0
    %79 = vmatprep.subr.mxu0 0.0
    %80 = vmatpush1.msra.mxu0 0.0
    %81 = vmatprep.subr.mxu0 0.0
    %82 = vmatpush1.msra.mxu0 0.0
    %83 = vmatprep.subr.mxu0 0.0
    %84 = vmatpush1.msra.mxu0 0.0
    %85 = vmatprep.subr.mxu0 0.0
    %86 = vmatpush1.msra.mxu0 0.0
    %87 = vmatprep.subr.mxu0 0.0
    %88 = vmatpush1.msra.mxu0 0.0
    %89 = vmatprep.subr.mxu0 0.0
    %90 = vmatpush1.msra.mxu0 0.0
    %91 = vmatprep.subr.mxu0 0.0
    %92 = vmatpush1.msra.mxu0 0.0
    %93 = vmatprep.subr.mxu0 0.0
    %94 = vmatpush1.msra.mxu0 0.0
    %95 = vmatprep.subr.mxu0 0.0
    %96 = vmatpush1.msra.mxu0 0.0
    %97 = vmatprep.subr.mxu0 0.0
    %98 = vmatpush1.msra.mxu0 0.0
    %99 = vmatprep.subr.mxu0 0.0
    %100 = vmatpush1.msra.mxu0 0.0
    %101 = vmatprep.subr.mxu0 0.0
    %102 = vmatpush1.msra.mxu0 0.0
    %103 = vmatprep.subr.mxu0 0.0
    %104 = vmatpush1.msra.mxu0 0.0
    %105 = vmatprep.subr.mxu0 0.0
    %106 = vmatpush1.msra.mxu0 0.0
    %107 = vmatprep.subr.mxu0 0.0
    %108 = vmatpush1.msra.mxu0 0.0
    %109 = vmatprep.subr.mxu0 0.0
    %110 = vmatpush1.msra.mxu0 0.0
    %111 = vmatprep.subr.mxu0 0.0
    %112 = vmatpush1.msra.mxu0 0.0
    %113 = vmatprep.subr.mxu0 0.0
    %114 = vmatpush1.msra.mxu0 0.0
    %115 = vmatprep.subr.mxu0 0.0
    %116 = vmatpush1.msra.mxu0 0.0
    %117 = vmatprep.subr.mxu0 0.0
    %118 = vmatpush1.msra.mxu0 0.0
    %119 = vmatprep.subr.mxu0 0.0
    %120 = vmatpush1.msra.mxu0 0.0
    %121 = vmatprep.subr.mxu0 0.0
    %122 = vmatpush1.msra.mxu0 0.0
    %123 = vmatprep.subr.mxu0 0.0
    %124 = vmatpush1.msra.mxu0 0.0
    %125 = vmatprep.subr.mxu0 0.0
    %126 = vmatpush1.msra.mxu0 0.0
    %127 = vmatprep.subr.mxu0 0.0
    %128 = vmatpush1.msra.mxu0 0.0
    %129 = vmatprep.mubr.f32.mxu0 0.0
    %130 = vmatmul.mubr.f32.gmra.mrb[0].mxu0 %v60
    %v131 = vpop.f32.mrb[0].mxu0
    %v132 = vadd.f32 %v56, %v131
    %v133 = vpop.f32.mrb[0].mxu0
    %134 = vmatprep.mubr.f32.mxu0 0.0
    %135 = vmatmul.mubr.f32.gmra.mrb[0].mxu0 %v63
    %v136 = vpop.f32.mrb[0].mxu0
    %v137 = vadd.f32 %v56, %v136
    %v138 = vpop.f32.mrb[0].mxu0
    %139 = vdwg.mxu0
    %140 = vst.msk [vmem:[#allocation9] sm:$0xff] %vm58, %v132
    %141 = vst.msk [vmem:[#allocation9 + $0x8] sm:$0xff] %vm58, %v137
    // Predicated region
    $region22: #{tpu_custom_call.1} parent=1 // pred_check
      _
    $region23: #{tpu_custom_call.1} parent=1 // pred_check_branch
      %143 = sbr.rel (0) target = $region25
    $region24: #{tpu_custom_call.1} parent=1 // pred_region
      %s145 = ssub.s32 256, 256
      %146 = vsyncadd [#allocation6], %s145
      %s147 = sshll.u32 [#allocation9], 4
      %s148 = int_to_ptr.vmem [resolvable:$true] %s147
      %153 = dma.vmem_to_hbm [thread:$0]  %s148, 256, %s4, [#allocation6], 128, 128, 8
    $region25: #{tpu_custom_call.1} parent=1 // pred_fallthru
      _
    // Predicated region
    $region26: #{tpu_custom_call.1} parent=1 // pred_check
      _
    $region27: #{tpu_custom_call.1} parent=1 // pred_check_branch
      %155 = sbr.rel (0) target = $region29
    $region28: #{tpu_custom_call.1} parent=1 // pred_region
      %156 = dma.done [#allocation6], 256
    $region29: #{tpu_custom_call.1} parent=1 // pred_fallthru
      _
    %157 = vsyncpa [#allocation5], 1
    %158 = vsyncpa [#allocation8], 1
    %159 = vsyncpa [#allocation6], 1

</llo_original>
